<compile_context>
chip_gen: v5e
topology: v5e:2x2
jax: 0.10.0
libtpu: 0.0.40
codegen_flags: <defaults>
</compile_context>

<pallas_src>
import functools
import math

import jax
import jax.numpy as jnp
from jax.experimental import pallas as pl
from jax.experimental.pallas import tpu as pltpu


def _flash_sdpa_kernel(q_ref, k_ref, v_ref, *rest, scale: float,
                       apply_mask: bool, q_tile: int, k_tile: int,
                       apply_wo: bool):
    if apply_wo:
        wo_ref, bo_ref, out_ref, m_sc, l_sc, acc_sc = rest
    else:
        out_ref, m_sc, l_sc, acc_sc = rest

    kv = pl.program_id(2)

    @pl.when(kv == 0)
    def _():
        m_sc[...] = jnp.full_like(m_sc, -jnp.inf)
        l_sc[...] = jnp.zeros_like(l_sc)
        acc_sc[...] = jnp.zeros_like(acc_sc)

    q_start = pl.program_id(1) * q_tile
    k_start = kv * k_tile

    def attend_block():
        # Fold 1/sqrt(dk) into the (small) q tile instead of the [tq, tk] scores.
        q = q_ref[0] * scale                      # [tq, D], compute dtype
        k = k_ref[0]                              # [tk, D]
        # Q @ K^T on the MXU, f32 accumulation.
        s = jax.lax.dot_general(q, k, (((1,), (1,)), ((), ())),
                                preferred_element_type=jnp.float32)  # [tq, tk]

        if apply_mask:
            # Strict upper-triangular (torch.triu(..., 1)) mask, built from
            # [tq,1] / [1,tk] iotas that broadcast in the compare.
            q_pos = q_start + jax.lax.broadcasted_iota(jnp.int32, (q_tile, 1), 0)
            k_pos = k_start + jax.lax.broadcasted_iota(jnp.int32, (1, k_tile), 1)
            s = jnp.where(k_pos > q_pos, -jnp.inf, s)

        # Online (flash) softmax update.
        m_prev = m_sc[...]
        m_new = jnp.maximum(m_prev, jnp.max(s, axis=-1, keepdims=True))
        alpha = jnp.exp(m_prev - m_new)
        p = jnp.exp(s - m_new)                                   # [tq, tk] f32
        l_sc[...] = alpha * l_sc[...] + jnp.sum(p, axis=-1, keepdims=True)
        acc_sc[...] = alpha * acc_sc[...] + jnp.dot(
            p.astype(v_ref.dtype), v_ref[0],
            preferred_element_type=jnp.float32)                  # [tq, Dv] f32
        m_sc[...] = m_new

    if apply_mask:
        # Skip K blocks lying entirely above the diagonal for this q tile.
        pl.when(k_start <= q_start + (q_tile - 1))(attend_block)
    else:
        attend_block()

    @pl.when(kv == pl.num_programs(2) - 1)
    def _():
        l = l_sc[...]
        # Guard against fully-masked rows (only possible in pathological
        # cross-attention shapes); approx reciprocal runs on the EUP slot.
        inv_l = pl.reciprocal(jnp.where(l == 0.0, 1.0, l), approx=True)
        ctx = acc_sc[...] * inv_l                                # [tq, Dv] f32
        if apply_wo:
            # Wo passed pre-transposed [Dv, out_dim] (compute dtype); bias f32.
            ctx = jnp.dot(ctx.astype(wo_ref.dtype), wo_ref[...],
                          preferred_element_type=jnp.float32) + bo_ref[...]
        out_ref[0] = ctx.astype(out_ref.dtype)


def scaled_dot_attention(query: jnp.ndarray,
                         keys: jnp.ndarray,
                         values: jnp.ndarray,
                         *,
                         dk: int,
                         wo_weight: jnp.ndarray | None = None,
                         wo_bias: jnp.ndarray | None = None,
                         apply_mask: bool = False,
                         q_tile: int | None = None,
                         k_tile: int | None = None,
                         compute_dtype=jnp.bfloat16,
                         out_dtype=jnp.float32,
                         vmem_limit_bytes: int | None = None) -> jnp.ndarray:
    """Pallas-backed ScaledDotAttention.forward.

    query:  [B, Tq, D]   keys: [B, Tk, D]   values: [B, Tk, Dv]
    wo_weight (optional, PyTorch layout): [model_dim, Dv]; wo_bias: [model_dim].
    """
    B, Tq, Dq = query.shape
    Bk, Tk, Dkf = keys.shape
    Bv, Tv, Dv = values.shape
    assert B == Bk == Bv and Tk == Tv and Dq == Dkf

    apply_wo = wo_weight is not None
    if apply_wo:
        out_dim = wo_weight.shape[0]
        assert wo_weight.shape[1] == Dv
        # Pre-transposed [Dv, out_dim] in the compute dtype (outside the kernel).
        wo_t = jnp.asarray(wo_weight).astype(compute_dtype).T
        bo = jnp.asarray(wo_bias, jnp.float32).reshape(1, out_dim)
    else:
        out_dim = Dv

    # 256 tiles match the v6e/v7x 256-wide MXU; v5e (4x128 MXU) is fine too.
    if q_tile is None:
        q_tile = min(Tq, 256)
    if k_tile is None:
        k_tile = min(Tk, 256)
    assert Tq % q_tile == 0, "query length must divide by the query tile"
    assert Tk % k_tile == 0, "key length must divide by the key tile"

    grid = (B, Tq // q_tile, Tk // k_tile)
    kernel = functools.partial(
        _flash_sdpa_kernel,
        scale=1.0 / math.sqrt(float(dk)),
        apply_mask=bool(apply_mask),
        q_tile=int(q_tile),
        k_tile=int(k_tile),
        apply_wo=apply_wo,
    )

    in_specs = [
        pl.BlockSpec((1, q_tile, Dq), lambda b, i, k: (b, i, 0)),   # Q tile
        pl.BlockSpec((1, k_tile, Dq), lambda b, i, k: (b, k, 0)),   # K tile
        pl.BlockSpec((1, k_tile, Dv), lambda b, i, k: (b, k, 0)),   # V tile
    ]
    args = [query.astype(compute_dtype),
            keys.astype(compute_dtype),
            values.astype(compute_dtype)]
    if apply_wo:
        in_specs += [
            pl.BlockSpec((Dv, out_dim), lambda b, i, k: (0, 0)),    # Wo^T resident
            pl.BlockSpec((1, out_dim), lambda b, i, k: (0, 0)),     # bias resident
        ]
        args += [wo_t, bo]

    scratch_shapes = [
        pltpu.VMEM((q_tile, 1), jnp.float32),     # running max  m_i
        pltpu.VMEM((q_tile, 1), jnp.float32),     # running sum  l_i
        pltpu.VMEM((q_tile, Dv), jnp.float32),    # unnormalized accumulator
    ]

    cp_kwargs = dict(dimension_semantics=("parallel", "parallel", "arbitrary"))
    if vmem_limit_bytes is not None:
        cp_kwargs["vmem_limit_bytes"] = int(vmem_limit_bytes)

    return pl.pallas_call(
        kernel,
        out_shape=jax.ShapeDtypeStruct((B, Tq, out_dim), out_dtype),
        grid=grid,
        in_specs=in_specs,
        out_specs=pl.BlockSpec((1, q_tile, out_dim), lambda b, i, k: (b, i, 0)),
        scratch_shapes=scratch_shapes,
        compiler_params=pltpu.CompilerParams(**cp_kwargs),
    )(*args)


if __name__ == "__main__":
    # Small shapes consistent with the module: B=2, T=8, model_dim=dk=dv=32.
    model_dim, dk, dv = 32, 32, 32
    B, T = 2, 8

    key = jax.random.PRNGKey(0)
    kq, kk, kv_, kw, kb = jax.random.split(key, 5)
    query = jax.random.normal(kq, (B, T, model_dim), dtype=jnp.float32)
    keys = jax.random.normal(kk, (B, T, model_dim), dtype=jnp.float32)
    values = jax.random.normal(kv_, (B, T, dv), dtype=jnp.float32)

    # nn.Linear(dv, model_dim) params: weight [model_dim, dv], bias [model_dim].
    bound = 1.0 / math.sqrt(dv)
    wo_weight = jax.random.uniform(kw, (model_dim, dv), jnp.float32, -bound, bound)
    wo_bias = jax.random.uniform(kb, (model_dim,), jnp.float32, -bound, bound)

    def reference(q, k, v, apply_mask, use_wo):
        scores = jnp.einsum('bqd,bkd->bqk', q, k,
                            precision=jax.lax.Precision.HIGHEST) / jnp.sqrt(
                                jnp.float32(dk))
        if apply_mask:
            Tq = q.shape[1]
            mask = jnp.triu(jnp.ones((Tq, k.shape[1]), dtype=bool), 1)
            scores = jnp.where(mask[None], -jnp.inf, scores)
        w = jax.nn.softmax(scores, axis=-1)
        ctx = jnp.einsum('bqk,bkd->bqd', w, v,
                         precision=jax.lax.Precision.HIGHEST)
        if use_wo:
            ctx = ctx @ wo_weight.T + wo_bias
        return ctx

    # 1) no mask, with Wo, f32 compute path (tight check of the fused kernel).
    out = scaled_dot_attention(query, keys, values, dk=dk,
                               wo_weight=wo_weight, wo_bias=wo_bias,
                               apply_mask=False, compute_dtype=jnp.float32)
    out = jax.block_until_ready(out)
    ref = reference(query, keys, values, False, True)
    assert out.shape == (B, T, model_dim)
    assert jnp.allclose(out, ref, atol=1e-2, rtol=1e-2), "mismatch (no mask, Wo, f32)"

    # 2) causal mask, with Wo, f32 compute path.
    out_m = scaled_dot_attention(query, keys, values, dk=dk,
                                 wo_weight=wo_weight, wo_bias=wo_bias,
                                 apply_mask=True, compute_dtype=jnp.float32)
    out_m = jax.block_until_ready(out_m)
    ref_m = reference(query, keys, values, True, True)
    assert jnp.allclose(out_m, ref_m, atol=1e-2, rtol=1e-2), "mismatch (mask, Wo, f32)"

    # 3) causal mask, Wo == Identity (apply_Wo=False path), f32.
    out_i = scaled_dot_attention(query, keys, values, dk=dk, apply_mask=True,
                                 compute_dtype=jnp.float32)
    out_i = jax.block_until_ready(out_i)
    ref_i = reference(query, keys, values, True, False)
    assert jnp.allclose(out_i, ref_i, atol=1e-2, rtol=1e-2), "mismatch (mask, Id, f32)"

    # 4) production-config bf16 compute path (f32 accumulate), looser tolerance.
    out_bf = scaled_dot_attention(query, keys, values, dk=dk,
                                  wo_weight=wo_weight, wo_bias=wo_bias,
                                  apply_mask=True)     # bf16 default
    out_bf = jax.block_until_ready(out_bf)
    assert jnp.allclose(out_bf, ref_m, atol=1e-1, rtol=1e-1), "mismatch (mask, Wo, bf16)"

    # 5) multi-tile flash path: several q and k blocks, causal skipping exercised.
    T2 = 64
    kq2, kk2, kv2 = jax.random.split(jax.random.PRNGKey(1), 3)
    q2 = jax.random.normal(kq2, (B, T2, model_dim), dtype=jnp.float32)
    k2 = jax.random.normal(kk2, (B, T2, model_dim), dtype=jnp.float32)
    v2 = jax.random.normal(kv2, (B, T2, dv), dtype=jnp.float32)
    out_t = scaled_dot_attention(q2, k2, v2, dk=dk,
                                 wo_weight=wo_weight, wo_bias=wo_bias,
                                 apply_mask=True, q_tile=16, k_tile=16,
                                 compute_dtype=jnp.float32)
    out_t = jax.block_until_ready(out_t)
    ref_t = reference(q2, k2, v2, True, True)
    assert jnp.allclose(out_t, ref_t, atol=1e-2, rtol=1e-2), "mismatch (tiled flash)"

    print("KERNEL_OK")
</pallas_src>

<mosaic_0001>
module attributes {stable_mosaic.version = 11 : i64} {
  func.func @_flash_sdpa_kernel(%arg0: i32, %arg1: i32, %arg2: i32, %arg3: memref<1x8x32xf32, #tpu.memory_space<vmem>>, %arg4: memref<1x8x32xf32, #tpu.memory_space<vmem>>, %arg5: memref<1x8x32xf32, #tpu.memory_space<vmem>>, %arg6: memref<32x32xf32, #tpu.memory_space<vmem>>, %arg7: memref<1x32xf32, #tpu.memory_space<vmem>>, %arg8: memref<1x8x32xf32, #tpu.memory_space<vmem>>, %arg9: memref<8x1xf32, #tpu.memory_space<vmem>>, %arg10: memref<8x1xf32, #tpu.memory_space<vmem>>, %arg11: memref<8x32xf32, #tpu.memory_space<vmem>>) attributes {dimension_semantics = [#tpu.dimension_semantics<parallel>, #tpu.dimension_semantics<parallel>, #tpu.dimension_semantics<arbitrary>], iteration_bounds = array<i64: 2, 1, 1>, scalar_prefetch = 0 : i64, scratch_operands = 3 : i64, tpu.core_type = #tpu.core_type<tc>, window_params = [{transform_indices = @transform_0, window_bounds = array<i64: 1, 8, 32>}, {transform_indices = @transform_1, window_bounds = array<i64: 1, 8, 32>}, {transform_indices = @transform_2, window_bounds = array<i64: 1, 8, 32>}, {pipeline_mode = #tpu.pipeline_mode<synchronous>, transform_indices = @transform_3, window_bounds = array<i64: 32, 32>}, {pipeline_mode = #tpu.pipeline_mode<synchronous>, transform_indices = @transform_4, window_bounds = array<i64: 1, 32>}, {transform_indices = @transform_5, window_bounds = array<i64: 1, 8, 32>}]} {
    %c0_i32 = arith.constant 0 : i32
    %0 = arith.cmpi eq, %arg2, %c0_i32 : i32
    %1 = arith.extui %0 : i1 to i32
    %c0_i32_0 = arith.constant 0 : i32
    %2 = arith.cmpi ne, %1, %c0_i32_0 : i32
    scf.if %2 {
      %cst_27 = arith.constant 0xFF800000 : f32
      %37 = vector.broadcast %cst_27 : f32 to vector<8x1xf32>
      %c0_28 = arith.constant 0 : index
      %c0_29 = arith.constant 0 : index
      %38 = vector.load %arg9[%c0_28, %c0_29] : memref<8x1xf32, #tpu.memory_space<vmem>>, vector<8x1xf32>
      tpu.vector_store %arg9[%c0_28, %c0_29], %37 {strides = array<i32>} : memref<8x1xf32, #tpu.memory_space<vmem>>, vector<8x1xf32>,
      %cst_30 = arith.constant 0.000000e+00 : f32
      %39 = vector.broadcast %cst_30 : f32 to vector<8x1xf32>
      %c0_31 = arith.constant 0 : index
      %c0_32 = arith.constant 0 : index
      %40 = vector.load %arg10[%c0_31, %c0_32] : memref<8x1xf32, #tpu.memory_space<vmem>>, vector<8x1xf32>
      tpu.vector_store %arg10[%c0_31, %c0_32], %39 {strides = array<i32>} : memref<8x1xf32, #tpu.memory_space<vmem>>, vector<8x1xf32>,
      %cst_33 = arith.constant 0.000000e+00 : f32
      %41 = vector.broadcast %cst_33 : f32 to vector<8x32xf32>
      %c0_34 = arith.constant 0 : index
      %c0_35 = arith.constant 0 : index
      %42 = vector.load %arg11[%c0_34, %c0_35] : memref<8x32xf32, #tpu.memory_space<vmem>>, vector<8x32xf32>
      tpu.vector_store %arg11[%c0_34, %c0_35], %41 {strides = array<i32>} : memref<8x32xf32, #tpu.memory_space<vmem>>, vector<8x32xf32>,
    } else {
    }
    %c0 = arith.constant 0 : index
    %c0_1 = arith.constant 0 : index
    %c0_2 = arith.constant 0 : index
    %3 = vector.load %arg3[%c0, %c0_1, %c0_2] : memref<1x8x32xf32, #tpu.memory_space<vmem>>, vector<1x8x32xf32>
    %4 = vector.shape_cast %3 : vector<1x8x32xf32> to vector<8x32xf32>
    %cst = arith.constant 0.176776692 : f32
    %5 = vector.broadcast %cst : f32 to vector<8x32xf32>
    %6 = arith.mulf %4, %5 : vector<8x32xf32>
    %c0_3 = arith.constant 0 : index
    %c0_4 = arith.constant 0 : index
    %c0_5 = arith.constant 0 : index
    %7 = vector.load %arg4[%c0_3, %c0_4, %c0_5] : memref<1x8x32xf32, #tpu.memory_space<vmem>>, vector<1x8x32xf32>
    %8 = vector.shape_cast %7 : vector<1x8x32xf32> to vector<8x32xf32>
    %cst_6 = arith.constant dense<0.000000e+00> : vector<8x8xf32>
    %9 = tpu.matmul %6, %8, %cst_6 {dimension_numbers = #tpu.dot_dimension_numbers<[1], [1], [0], [0], [0, 0, 1, 0], [], []>} : vector<8x32xf32>, vector<8x32xf32>, vector<8x8xf32> -> vector<8x8xf32>
    %c0_7 = arith.constant 0 : index
    %c0_8 = arith.constant 0 : index
    %10 = vector.load %arg9[%c0_7, %c0_8] : memref<8x1xf32, #tpu.memory_space<vmem>>, vector<8x1xf32>
    %cst_9 = arith.constant dense<0xFF800000> : vector<8xf32>
    %11 = vector.multi_reduction <maximumf>, %9, %cst_9 [1] : vector<8x8xf32> to vector<8xf32>
    %12 = vector.shape_cast %11 : vector<8xf32> to vector<8x1xf32>
    %13 = arith.maximumf %10, %12 : vector<8x1xf32>
    %14 = arith.subf %10, %13 : vector<8x1xf32>
    %15 = math.exp %14 : vector<8x1xf32>
    %16 = vector.broadcast %13 : vector<8x1xf32> to vector<8x8xf32>
    %17 = arith.subf %9, %16 : vector<8x8xf32>
    %18 = math.exp %17 : vector<8x8xf32>
    %c0_10 = arith.constant 0 : index
    %c0_11 = arith.constant 0 : index
    %19 = vector.load %arg10[%c0_10, %c0_11] : memref<8x1xf32, #tpu.memory_space<vmem>>, vector<8x1xf32>
    %20 = arith.mulf %15, %19 : vector<8x1xf32>
    %cst_12 = arith.constant dense<0.000000e+00> : vector<8xf32>
    %21 = vector.multi_reduction <add>, %18, %cst_12 [1] : vector<8x8xf32> to vector<8xf32>
    %22 = vector.shape_cast %21 : vector<8xf32> to vector<8x1xf32>
    %23 = arith.addf %20, %22 : vector<8x1xf32>
    %c0_13 = arith.constant 0 : index
    %c0_14 = arith.constant 0 : index
    %24 = vector.load %arg10[%c0_13, %c0_14] : memref<8x1xf32, #tpu.memory_space<vmem>>, vector<8x1xf32>
    tpu.vector_store %arg10[%c0_13, %c0_14], %23 {strides = array<i32>} : memref<8x1xf32, #tpu.memory_space<vmem>>, vector<8x1xf32>,
    %c0_15 = arith.constant 0 : index
    %c0_16 = arith.constant 0 : index
    %25 = vector.load %arg11[%c0_15, %c0_16] : memref<8x32xf32, #tpu.memory_space<vmem>>, vector<8x32xf32>
    %26 = vector.broadcast %15 : vector<8x1xf32> to vector<8x32xf32>
    %27 = arith.mulf %26, %25 : vector<8x32xf32>
    %c0_17 = arith.constant 0 : index
    %c0_18 = arith.constant 0 : index
    %c0_19 = arith.constant 0 : index
    %28 = vector.load %arg5[%c0_17, %c0_18, %c0_19] : memref<1x8x32xf32, #tpu.memory_space<vmem>>, vector<1x8x32xf32>
    %29 = vector.shape_cast %28 : vector<1x8x32xf32> to vector<8x32xf32>
    %cst_20 = arith.constant dense<0.000000e+00> : vector<8x32xf32>
    %30 = tpu.matmul %18, %29, %cst_20 {dimension_numbers = #tpu.dot_dimension_numbers<[1], [0], [0], [1], [0, 0, 1, 1], [], []>} : vector<8x8xf32>, vector<8x32xf32>, vector<8x32xf32> -> vector<8x32xf32>
    %31 = arith.addf %27, %30 : vector<8x32xf32>
    %c0_21 = arith.constant 0 : index
    %c0_22 = arith.constant 0 : index
    %32 = vector.load %arg11[%c0_21, %c0_22] : memref<8x32xf32, #tpu.memory_space<vmem>>, vector<8x32xf32>
    tpu.vector_store %arg11[%c0_21, %c0_22], %31 {strides = array<i32>} : memref<8x32xf32, #tpu.memory_space<vmem>>, vector<8x32xf32>,
    %c0_23 = arith.constant 0 : index
    %c0_24 = arith.constant 0 : index
    %33 = vector.load %arg9[%c0_23, %c0_24] : memref<8x1xf32, #tpu.memory_space<vmem>>, vector<8x1xf32>
    tpu.vector_store %arg9[%c0_23, %c0_24], %13 {strides = array<i32>} : memref<8x1xf32, #tpu.memory_space<vmem>>, vector<8x1xf32>,
    %c0_i32_25 = arith.constant 0 : i32
    %34 = arith.cmpi eq, %arg2, %c0_i32_25 : i32
    %35 = arith.extui %34 : i1 to i32
    %c0_i32_26 = arith.constant 0 : i32
    %36 = arith.cmpi ne, %35, %c0_i32_26 : i32
    scf.if %36 {
      %c0_27 = arith.constant 0 : index
      %c0_28 = arith.constant 0 : index
      %37 = vector.load %arg10[%c0_27, %c0_28] : memref<8x1xf32, #tpu.memory_space<vmem>>, vector<8x1xf32>
      %cst_29 = arith.constant 0.000000e+00 : f32
      %38 = vector.broadcast %cst_29 : f32 to vector<8x1xf32>
      %39 = arith.cmpf oeq, %37, %38 : vector<8x1xf32>
      %cst_30 = arith.constant 1.000000e+00 : f32
      %40 = vector.broadcast %cst_30 : f32 to vector<8x1xf32>
      %41 = arith.select %39, %40, %37 : vector<8x1xi1>, vector<8x1xf32>
      %42 = tpu.reciprocal %41 {approx = true} : vector<8x1xf32> -> vector<8x1xf32>
      %c0_31 = arith.constant 0 : index
      %c0_32 = arith.constant 0 : index
      %43 = vector.load %arg11[%c0_31, %c0_32] : memref<8x32xf32, #tpu.memory_space<vmem>>, vector<8x32xf32>
      %44 = vector.broadcast %42 : vector<8x1xf32> to vector<8x32xf32>
      %45 = arith.mulf %43, %44 : vector<8x32xf32>
      %c0_33 = arith.constant 0 : index
      %c0_34 = arith.constant 0 : index
      %46 = vector.load %arg6[%c0_33, %c0_34] : memref<32x32xf32, #tpu.memory_space<vmem>>, vector<32x32xf32>
      %cst_35 = arith.constant dense<0.000000e+00> : vector<8x32xf32>
      %47 = tpu.matmul %45, %46, %cst_35 {dimension_numbers = #tpu.dot_dimension_numbers<[1], [0], [0], [1], [0, 0, 1, 1], [], []>} : vector<8x32xf32>, vector<32x32xf32>, vector<8x32xf32> -> vector<8x32xf32>
      %c0_36 = arith.constant 0 : index
      %c0_37 = arith.constant 0 : index
      %48 = vector.load %arg7[%c0_36, %c0_37] : memref<1x32xf32, #tpu.memory_space<vmem>>, vector<1x32xf32>
      %49 = vector.broadcast %48 : vector<1x32xf32> to vector<8x32xf32>
      %50 = arith.addf %47, %49 : vector<8x32xf32>
      %c0_38 = arith.constant 0 : index
      %c0_39 = arith.constant 0 : index
      %c0_40 = arith.constant 0 : index
      %51 = vector.load %arg8[%c0_38, %c0_39, %c0_40] : memref<1x8x32xf32, #tpu.memory_space<vmem>>, vector<1x8x32xf32>
      %52 = vector.shape_cast %51 : vector<1x8x32xf32> to vector<8x32xf32>
      %53 = vector.shape_cast %50 : vector<8x32xf32> to vector<1x8x32xf32>
      tpu.vector_store %arg8[%c0_38, %c0_39, %c0_40], %53 {strides = array<i32>} : memref<1x8x32xf32, #tpu.memory_space<vmem>>, vector<1x8x32xf32>,
    } else {
    }
    return
  }
  func.func @transform_0(%arg0: i32, %arg1: i32, %arg2: i32) -> (i32, i32, i32) {
    %c0_i32 = arith.constant 0 : i32
    %c0_i32_0 = arith.constant 0 : i32
    return %arg0, %arg1, %c0_i32 : i32, i32, i32
  }
  func.func @transform_1(%arg0: i32, %arg1: i32, %arg2: i32) -> (i32, i32, i32) {
    %c0_i32 = arith.constant 0 : i32
    %c0_i32_0 = arith.constant 0 : i32
    return %arg0, %arg2, %c0_i32 : i32, i32, i32
  }
  func.func @transform_2(%arg0: i32, %arg1: i32, %arg2: i32) -> (i32, i32, i32) {
    %c0_i32 = arith.constant 0 : i32
    %c0_i32_0 = arith.constant 0 : i32
    return %arg0, %arg2, %c0_i32 : i32, i32, i32
  }
  func.func @transform_3(%arg0: i32, %arg1: i32, %arg2: i32) -> (i32, i32) {
    %c0_i32 = arith.constant 0 : i32
    %c0_i32_0 = arith.constant 0 : i32
    %c0_i32_1 = arith.constant 0 : i32
    return %c0_i32, %c0_i32_0 : i32, i32
  }
  func.func @transform_4(%arg0: i32, %arg1: i32, %arg2: i32) -> (i32, i32) {
    %c0_i32 = arith.constant 0 : i32
    %c0_i32_0 = arith.constant 0 : i32
    %c0_i32_1 = arith.constant 0 : i32
    return %c0_i32, %c0_i32_0 : i32, i32
  }
  func.func @transform_5(%arg0: i32, %arg1: i32, %arg2: i32) -> (i32, i32, i32) {
    %c0_i32 = arith.constant 0 : i32
    %c0_i32_0 = arith.constant 0 : i32
    return %arg0, %arg1, %c0_i32 : i32, i32, i32
  }
}

</mosaic_0001>

<llo_original>
// kernel: tpu_custom_call.1
$region0: #{tpu_custom_call.1}
  #allocation0 [shape = 'u32[]', space=smem, size = 0x4, offset = 0x4, fixed_abs, tag = 'smem constant byte address 0x4 - core index']
  #allocation1 [shape = 'u32[72,128]{1,0:T(1,128)}', space=vmem, size = 0x9000, scoped, tag = 'internal scratch']
  #allocation2 [shape = 'f32[8,1]{1,0:T(8,128)}', space=vmem, size = 0x1000, scoped, tag = 'scratch operand']
  #allocation3 [shape = 'f32[8,1]{1,0:T(8,128)}', space=vmem, size = 0x1000, scoped, tag = 'scratch operand']
  #allocation4 [shape = 'f32[8,32]{1,0:T(8,128)}', space=vmem, size = 0x1000, scoped, tag = 'scratch operand']
  %s0 = inlined_call_operand.hbm [shape: f32[2,8,32], index: 0, kind: input, shape index: {}]
  %s1 = inlined_call_operand.hbm [shape: f32[2,8,32], index: 1, kind: input, shape index: {}]
  %s2 = inlined_call_operand.hbm [shape: f32[2,8,32], index: 2, kind: input, shape index: {}]
  %s3 = inlined_call_operand.hbm [shape: f32[32,32], index: 3, kind: input, shape index: {}]
  %s4 = inlined_call_operand.vmem [shape: f32[1,32], index: 4, kind: input, shape index: {}]
  %s5 = inlined_call_operand.hbm [shape: f32[2,8,32], index: 5, kind: output, shape index: {}]
  %s6 = sld [smem:[#allocation0]]
  $region77: #{tpu_custom_call.1} parent=0
    _
  %s8 = ssub.s32 1, %s6
  %s9 = scalar_select 0, %s8, %s6
  $region1: #{tpu_custom_call.1} parent=0
    #allocation5 [shape = 'u8[8192]{0}', space=vmem, size = 0x2000, scoped, tag = 'input window, operand 0']
    #allocation6 [shape = 's32[2]{0}', space=sflag, size = 0x8, scoped, tag = 'scoped memory for tpu_custom_call.1']
    #allocation7 [shape = 's32[2]{0}', space=sflag, size = 0x8, scoped, tag = 'scoped memory for tpu_custom_call.1']
    #allocation8 [shape = 'u8[8192]{0}', space=vmem, size = 0x2000, scoped, tag = 'input window, operand 1']
    #allocation9 [shape = 's32[2]{0}', space=sflag, size = 0x8, scoped, tag = 'scoped memory for tpu_custom_call.1']
    #allocation10 [shape = 'u8[8192]{0}', space=vmem, size = 0x2000, scoped, tag = 'input window, operand 2']
    #allocation11 [shape = 'u8[16384]{0}', space=vmem, size = 0x4000, scoped, tag = 'input window, operand 3, single buffered']
    #allocation12 [shape = 's32[1]{0}', space=sflag, size = 0x4, scoped, tag = 'scoped memory for tpu_custom_call.1']
    #allocation13 [shape = 'u8[8192]{0}', space=vmem, size = 0x2000, scoped, tag = 'output window, operand 0']
    %10 = vsyncpa [#allocation6], 0
    %s11 = scalar_lea.sflag [#allocation6], 1
    %12 = vsyncpa %s11, 0
    %13 = vsyncpa [#allocation9], 0
    %s14 = scalar_lea.sflag [#allocation9], 1
    %15 = vsyncpa %s14, 0
    %16 = vsyncpa [#allocation12], 0
    %17 = vsyncpa [#allocation7], 0
    %s18 = scalar_lea.sflag [#allocation7], 1
    %19 = vsyncpa %s18, 0
    loop: start=0, step=1, limit=4
    $region2: #{tpu_custom_call.1} parent=1 // loop_pre_header
      _
    $region3: #{tpu_custom_call.1} parent=1 // loop_header
      %s21 = sphi 0, %s25
      %p22 = scmp.ge.s32.totalorder %s21, 4
      %s28 = sphi 0, %s47
      %s29 = sphi 0, %s43
      %s30 = sphi 0, %s39
      %s31 = sphi 0, %s28
      %s32 = sphi 0, %s29
      %s33 = sphi 0, %s30
      %s34 = sphi 0, %s31
      %s35 = sphi 0, %s32
      %s36 = sphi 0, %s33
      %s52 = sphi 0, %s54
      %s55 = sphi 0, %s52
      %s56 = sphi 0, %s55
      %s72 = sphi 0, %s56
      %s80 = sphi 0, %s82
      %s83 = sphi 0, %s80
      %s84 = sphi 0, %s83
      %s100 = sphi 0, %s84
      %s108 = sphi 0, %s110
      %s111 = sphi 0, %s108
      %s112 = sphi 0, %s111
      %s128 = sphi 0, %s112
      %s132 = sphi 0, %s132
      %s134 = sphi 0, %s132
      %s135 = sphi 0, %s134
      %s149 = sphi 0, %s135
      %s153 = sphi 0, %s153
      %s155 = sphi 0, %s153
      %s156 = sphi 0, %s155
      %s170 = sphi 0, %s156
      %s178 = sphi 0, %s180
      %s181 = sphi 0, %s178
      %s182 = sphi 0, %s181
      %s198 = sphi 0, %s182
    $region4: #{tpu_custom_call.1} parent=1 // loop_header_branch
      %24 = sbr.rel (%p22) target = $region8
    $region5: #{tpu_custom_call.1} parent=1 // loop_body
      %s26 = ssub.s32 %s21, 1
      %s27 = ssub.s32 %s21, 2
      %s37 = sadd.s32 1, %s30
      %p38 = scmp.ge.s32.totalorder %s37, 1
      %s39 = scalar_select %p38, 0, %s37
      %s40 = sadd.s32 1, %s29
      %s41 = scalar_select %p38, %s40, %s29
      %p42 = scmp.ge.s32.totalorder %s41, 1
      %s43 = scalar_select %p42, 0, %s41
      %s44 = sadd.s32 1, %s28
      %s45 = scalar_select %p42, %s44, %s28
      %p46 = scmp.ge.s32.totalorder %s45, 2
      %s47 = scalar_select %p46, 0, %s45
      %s48 = ssub.s32 %s28, %s47
      %s49 = ssub.s32 %s29, %s43
      %s50 = sor.u32 %s48, %s49
      %p51 = scmp.eq.s32.totalorder %s50, 0
      %s53 = sadd.s32 %s52, 1
      %s54 = scalar_select %p51, %s52, %s53
      %p57 = pneg %p51
      %p58 = scmp.eq.s32.totalorder %s21, 1
      %p59 = por %p57, %p58
      %p60 = scmp.ne.s32.totalorder %s52, %s55
      %p61 = scmp.eq.s32.totalorder %s21, 0
      %p62 = por %p60, %p61
      %p63 = scmp.ne.s32.totalorder %s52, %s55
      %p64 = scmp.eq.s32.totalorder %s26, 1
      %p65 = por %p63, %p64
      %p66 = scmp.ne.s32.totalorder %s55, %s56
      %p67 = scmp.eq.s32.totalorder %s26, 0
      %p68 = por %p66, %p67
      %p69 = scmp.ne.s32.totalorder %s55, %s56
      %p70 = scmp.eq.s32.totalorder %s27, 1
      %p71 = por %p69, %p70
      %p73 = scmp.ne.s32.totalorder %s56, %s72
      %p74 = scmp.eq.s32.totalorder %s27, 0
      %p75 = por %p73, %p74
      %s76 = ssub.s32 %s28, %s47
      %s77 = ssub.s32 %s30, %s39
      %s78 = sor.u32 %s76, %s77
      %p79 = scmp.eq.s32.totalorder %s78, 0
      %s81 = sadd.s32 %s80, 1
      %s82 = scalar_select %p79, %s80, %s81
      %p85 = pneg %p79
      %p86 = scmp.eq.s32.totalorder %s21, 1
      %p87 = por %p85, %p86
      %p88 = scmp.ne.s32.totalorder %s80, %s83
      %p89 = scmp.eq.s32.totalorder %s21, 0
      %p90 = por %p88, %p89
      %p91 = scmp.ne.s32.totalorder %s80, %s83
      %p92 = scmp.eq.s32.totalorder %s26, 1
      %p93 = por %p91, %p92
      %p94 = scmp.ne.s32.totalorder %s83, %s84
      %p95 = scmp.eq.s32.totalorder %s26, 0
      %p96 = por %p94, %p95
      %p97 = scmp.ne.s32.totalorder %s83, %s84
      %p98 = scmp.eq.s32.totalorder %s27, 1
      %p99 = por %p97, %p98
      %p101 = scmp.ne.s32.totalorder %s84, %s100
      %p102 = scmp.eq.s32.totalorder %s27, 0
      %p103 = por %p101, %p102
      %s104 = ssub.s32 %s28, %s47
      %s105 = ssub.s32 %s30, %s39
      %s106 = sor.u32 %s104, %s105
      %p107 = scmp.eq.s32.totalorder %s106, 0
      %s109 = sadd.s32 %s108, 1
      %s110 = scalar_select %p107, %s108, %s109
      %p113 = pneg %p107
      %p114 = scmp.eq.s32.totalorder %s21, 1
      %p115 = por %p113, %p114
      %p116 = scmp.ne.s32.totalorder %s108, %s111
      %p117 = scmp.eq.s32.totalorder %s21, 0
      %p118 = por %p116, %p117
      %p119 = scmp.ne.s32.totalorder %s108, %s111
      %p120 = scmp.eq.s32.totalorder %s26, 1
      %p121 = por %p119, %p120
      %p122 = scmp.ne.s32.totalorder %s111, %s112
      %p123 = scmp.eq.s32.totalorder %s26, 0
      %p124 = por %p122, %p123
      %p125 = scmp.ne.s32.totalorder %s111, %s112
      %p126 = scmp.eq.s32.totalorder %s27, 1
      %p127 = por %p125, %p126
      %p129 = scmp.ne.s32.totalorder %s112, %s128
      %p130 = scmp.eq.s32.totalorder %s27, 0
      %p131 = por %p129, %p130
      %s133 = sadd.s32 %s132, 1
      %p136 = scmp.eq.s32.totalorder %s21, 1
      %p137 = scmp.ne.s32.totalorder %s132, %s134
      %p138 = scmp.eq.s32.totalorder %s21, 0
      %p139 = por %p137, %p138
      %p140 = scmp.ne.s32.totalorder %s132, %s134
      %p141 = scmp.eq.s32.totalorder %s26, 1
      %p142 = por %p140, %p141
      %p143 = scmp.ne.s32.totalorder %s134, %s135
      %p144 = scmp.eq.s32.totalorder %s26, 0
      %p145 = por %p143, %p144
      %p146 = scmp.ne.s32.totalorder %s134, %s135
      %p147 = scmp.eq.s32.totalorder %s27, 1
      %p148 = por %p146, %p147
      %p150 = scmp.ne.s32.totalorder %s135, %s149
      %p151 = scmp.eq.s32.totalorder %s27, 0
      %p152 = por %p150, %p151
      %s154 = sadd.s32 %s153, 1
      %p157 = scmp.eq.s32.totalorder %s21, 1
      %p158 = scmp.ne.s32.totalorder %s153, %s155
      %p159 = scmp.eq.s32.totalorder %s21, 0
      %p160 = por %p158, %p159
      %p161 = scmp.ne.s32.totalorder %s153, %s155
      %p162 = scmp.eq.s32.totalorder %s26, 1
      %p163 = por %p161, %p162
      %p164 = scmp.ne.s32.totalorder %s155, %s156
      %p165 = scmp.eq.s32.totalorder %s26, 0
      %p166 = por %p164, %p165
      %p167 = scmp.ne.s32.totalorder %s155, %s156
      %p168 = scmp.eq.s32.totalorder %s27, 1
      %p169 = por %p167, %p168
      %p171 = scmp.ne.s32.totalorder %s156, %s170
      %p172 = scmp.eq.s32.totalorder %s27, 0
      %p173 = por %p171, %p172
      %s174 = ssub.s32 %s28, %s47
      %s175 = ssub.s32 %s29, %s43
      %s176 = sor.u32 %s174, %s175
      %p177 = scmp.eq.s32.totalorder %s176, 0
      %s179 = sadd.s32 %s178, 1
      %s180 = scalar_select %p177, %s178, %s179
      %p183 = pneg %p177
      %p184 = scmp.eq.s32.totalorder %s21, 1
      %p185 = por %p183, %p184
      %p186 = scmp.ne.s32.totalorder %s178, %s181
      %p187 = scmp.eq.s32.totalorder %s21, 0
      %p188 = por %p186, %p187
      %p189 = scmp.ne.s32.totalorder %s178, %s181
      %p190 = scmp.eq.s32.totalorder %s26, 1
      %p191 = por %p189, %p190
      %p192 = scmp.ne.s32.totalorder %s181, %s182
      %p193 = scmp.eq.s32.totalorder %s26, 0
      %p194 = por %p192, %p193
      %p195 = scmp.ne.s32.totalorder %s181, %s182
      %p196 = scmp.eq.s32.totalorder %s27, 1
      %p197 = por %p195, %p196
      %p199 = scmp.ne.s32.totalorder %s182, %s198
      %p200 = scmp.eq.s32.totalorder %s27, 0
      %p201 = por %p199, %p200
      %p202 = scmp.le.s32.totalorder 1, %s21
      %p203 = scmp.lt.s32.totalorder %s21, 3
      %p204 = pnand %p202, %p203
      %p205 = pneg %p204
      // Predicated region
      $region9: #{tpu_custom_call.1} parent=5 // pred_check
        _
      $region10: #{tpu_custom_call.1} parent=5 // pred_check_branch
        %207 = sbr.rel (%p204) target = $region12
      $region11: #{tpu_custom_call.1} parent=5 // pred_region
        %s208 = ssub.s32 %s21, 1
        // Predicated region
        $region13: #{tpu_custom_call.1} parent=11 // pred_check
          %p209 = pneg %p145
        $region14: #{tpu_custom_call.1} parent=11 // pred_check_branch
          %211 = sbr.rel (%p209) target = $region16
        $region15: #{tpu_custom_call.1} parent=11 // pred_region
          %213 = vsyncadd [#allocation12], 0
          %s214 = sshll.u32 %s3, 4
          %s215 = int_to_ptr.hbm [resolvable:$true] %s214
          %s216 = sshll.u32 [#allocation11], 4
          %s217 = int_to_ptr.vmem [resolvable:$true] %s216
          %222 = dma.hbm_to_vmem [thread:$0]  %s215, 512, %s217, [#allocation12], 128, 128, 8
        $region16: #{tpu_custom_call.1} parent=11 // pred_fallthru
          _
        // Predicated region
        $region17: #{tpu_custom_call.1} parent=11 // pred_check
          %p223 = pneg %p166
        $region18: #{tpu_custom_call.1} parent=11 // pred_check_branch
          %225 = sbr.rel (%p223) target = $region20
        $region19: #{tpu_custom_call.1} parent=11 // pred_region
          _
        $region20: #{tpu_custom_call.1} parent=11 // pred_fallthru
          _
      $region12: #{tpu_custom_call.1} parent=5 // pred_fallthru
        _
      %p226 = scmp.lt.s32.totalorder %s21, 2
      // Predicated region
      $region21: #{tpu_custom_call.1} parent=5 // pred_check
        %p227 = pneg %p226
      $region22: #{tpu_custom_call.1} parent=5 // pred_check_branch
        %229 = sbr.rel (%p227) target = $region24
      $region23: #{tpu_custom_call.1} parent=5 // pred_region
        // Predicated region
        $region25: #{tpu_custom_call.1} parent=23 // pred_check
          %p230 = pneg %p62
        $region26: #{tpu_custom_call.1} parent=23 // pred_check_branch
          %232 = sbr.rel (%p230) target = $region28
        $region27: #{tpu_custom_call.1} parent=23 // pred_region
          %s233 = sand.u32 %s52, 1
          %s234 = scalar_lea.sflag [#allocation6], %s233
          %s235 = sand.u32 %s52, 1
          %s236 = smul.addr %s235, 8
          %s237 = scalar_lea.vmem [#allocation5], %s236
          %239 = vsyncadd %s234, 0
          %s240 = sadd.s32 %s29, %s28
          %s241 = smul.addr %s240, 8
          %s242 = scalar_lea.hbm %s0, %s241
          %s244 = sshll.u32 %s242, 4
          %s245 = int_to_ptr.hbm [resolvable:$true] %s244
          %s246 = sshll.u32 %s237, 4
          %s247 = int_to_ptr.vmem [resolvable:$true] %s246
          %249 = dma.hbm_to_vmem [thread:$0]  %s245, 128, %s247, %s234
        $region28: #{tpu_custom_call.1} parent=23 // pred_fallthru
          _
        // Predicated region
        $region29: #{tpu_custom_call.1} parent=23 // pred_check
          %p250 = pneg %p90
        $region30: #{tpu_custom_call.1} parent=23 // pred_check_branch
          %252 = sbr.rel (%p250) target = $region32
        $region31: #{tpu_custom_call.1} parent=23 // pred_region
          %s253 = sand.u32 %s21, 1
          %s254 = scalar_lea.sflag [#allocation9], %s253
          %s255 = sand.u32 %s80, 1
          %s256 = smul.addr %s255, 8
          %s257 = scalar_lea.vmem [#allocation8], %s256
          %259 = vsyncadd %s254, 0
          %s260 = sadd.s32 %s30, %s28
          %s261 = smul.addr %s260, 8
          %s262 = scalar_lea.hbm %s1, %s261
          %s264 = sshll.u32 %s262, 4
          %s265 = int_to_ptr.hbm [resolvable:$true] %s264
          %s266 = sshll.u32 %s257, 4
          %s267 = int_to_ptr.vmem [resolvable:$true] %s266
          %269 = dma.hbm_to_vmem [thread:$0]  %s265, 128, %s267, %s254
        $region32: #{tpu_custom_call.1} parent=23 // pred_fallthru
          _
        // Predicated region
        $region33: #{tpu_custom_call.1} parent=23 // pred_check
          %p270 = pneg %p118
        $region34: #{tpu_custom_call.1} parent=23 // pred_check_branch
          %272 = sbr.rel (%p270) target = $region36
        $region35: #{tpu_custom_call.1} parent=23 // pred_region
          %s273 = sand.u32 %s21, 1
          %s274 = scalar_lea.sflag [#allocation9], %s273
          %s275 = sand.u32 %s108, 1
          %s276 = smul.addr %s275, 8
          %s277 = scalar_lea.vmem [#allocation10], %s276
          %279 = vsyncadd %s274, 0
          %s280 = sadd.s32 %s30, %s28
          %s281 = smul.addr %s280, 8
          %s282 = scalar_lea.hbm %s2, %s281
          %s284 = sshll.u32 %s282, 4
          %s285 = int_to_ptr.hbm [resolvable:$true] %s284
          %s286 = sshll.u32 %s277, 4
          %s287 = int_to_ptr.vmem [resolvable:$true] %s286
          %289 = dma.hbm_to_vmem [thread:$0]  %s285, 128, %s287, %s274
        $region36: #{tpu_custom_call.1} parent=23 // pred_fallthru
          _
      $region24: #{tpu_custom_call.1} parent=5 // pred_fallthru
        _
      %p290 = scmp.le.s32.totalorder 1, %s21
      %p291 = scmp.lt.s32.totalorder %s21, 3
      %p292 = pnand %p290, %p291
      %p293 = pneg %p292
      // Predicated region
      $region37: #{tpu_custom_call.1} parent=5 // pred_check
        _
      $region38: #{tpu_custom_call.1} parent=5 // pred_check_branch
        %295 = sbr.rel (%p292) target = $region40
      $region39: #{tpu_custom_call.1} parent=5 // pred_region
        %s296 = ssub.s32 %s21, 1
        %s297 = sand.u32 %s55, 1
        %s298 = scalar_lea.sflag [#allocation6], %s297
        %s299 = sand.u32 %s55, 1
        %s300 = smul.addr %s299, 8
        %s301 = scalar_lea.vmem [#allocation5], %s300
        // Predicated region
        $region41: #{tpu_custom_call.1} parent=39 // pred_check
          %p302 = pneg %p68
        $region42: #{tpu_custom_call.1} parent=39 // pred_check_branch
          %304 = sbr.rel (%p302) target = $region44
        $region43: #{tpu_custom_call.1} parent=39 // pred_region
          %306 = dma.done %s298, 128
        $region44: #{tpu_custom_call.1} parent=39 // pred_fallthru
          _
        %s307 = sand.u32 %s26, 1
        %s308 = scalar_lea.sflag [#allocation9], %s307
        %s309 = sand.u32 %s83, 1
        %s310 = smul.addr %s309, 8
        %s311 = scalar_lea.vmem [#allocation8], %s310
        // Predicated region
        $region45: #{tpu_custom_call.1} parent=39 // pred_check
          %p312 = pneg %p96
        $region46: #{tpu_custom_call.1} parent=39 // pred_check_branch
          %314 = sbr.rel (%p312) target = $region48
        $region47: #{tpu_custom_call.1} parent=39 // pred_region
          %316 = dma.done %s308, 128
        $region48: #{tpu_custom_call.1} parent=39 // pred_fallthru
          _
        %s317 = sand.u32 %s26, 1
        %s318 = scalar_lea.sflag [#allocation9], %s317
        %s319 = sand.u32 %s111, 1
        %s320 = smul.addr %s319, 8
        %s321 = scalar_lea.vmem [#allocation10], %s320
        // Predicated region
        $region49: #{tpu_custom_call.1} parent=39 // pred_check
          %p322 = pneg %p124
        $region50: #{tpu_custom_call.1} parent=39 // pred_check_branch
          %324 = sbr.rel (%p322) target = $region52
        $region51: #{tpu_custom_call.1} parent=39 // pred_region
          %326 = dma.done %s318, 128
        $region52: #{tpu_custom_call.1} parent=39 // pred_fallthru
          _
        // Predicated region
        $region53: #{tpu_custom_call.1} parent=39 // pred_check
          %p327 = pneg %p145
        $region54: #{tpu_custom_call.1} parent=39 // pred_check_branch
          %329 = sbr.rel (%p327) target = $region56
        $region55: #{tpu_custom_call.1} parent=39 // pred_region
          %331 = dma.done [#allocation12], 512
        $region56: #{tpu_custom_call.1} parent=39 // pred_fallthru
          _
        %s332 = sand.u32 %s55, 1
        %s333 = scalar_lea.sflag [#allocation6], %s332
        %s334 = sand.u32 %s55, 1
        %s335 = smul.addr %s334, 8
        %s336 = scalar_lea.vmem [#allocation5], %s335
        %p337 = pneg %p68
        %p338 = pneg %p65
        %s339 = sand.u32 %s26, 1
        %s340 = scalar_lea.sflag [#allocation9], %s339
        %s341 = sand.u32 %s83, 1
        %s342 = smul.addr %s341, 8
        %s343 = scalar_lea.vmem [#allocation8], %s342
        %p344 = pneg %p96
        %p345 = pneg %p93
        %s346 = sand.u32 %s26, 1
        %s347 = scalar_lea.sflag [#allocation9], %s346
        %s348 = sand.u32 %s111, 1
        %s349 = smul.addr %s348, 8
        %s350 = scalar_lea.vmem [#allocation10], %s349
        %p351 = pneg %p124
        %p352 = pneg %p121
        %p353 = pneg %p145
        %p354 = pneg %p142
        %p355 = pneg %p166
        %p356 = pneg %p163
        %p357 = pneg %p194
        %p358 = pneg %p191
        %s359 = sand.u32 %s181, 1
        %s360 = scalar_lea.sflag [#allocation7], %s359
        %s361 = sand.u32 %s181, 1
        %s362 = smul.addr %s361, 8
        %s363 = scalar_lea.vmem [#allocation13], %s362
        %p364 = scmp.eq.s32.totalorder %s33, 0
        // Predicated region
        $region57: #{tpu_custom_call.1} parent=39 // pred_check
          %p365 = pneg %p364
        $region58: #{tpu_custom_call.1} parent=39 // pred_check_branch
          %367 = sbr.rel (%p365) target = $region60
        $region59: #{tpu_custom_call.1} parent=39 // pred_region
          %vm368 = vcmask 7168
          %369 = vst.msk [vmem:[#allocation2] sm:$0xff] %vm368, -inf
          %370 = vst.msk [vmem:[#allocation3] sm:$0xff] %vm368, 0.0
          %vm371 = vcmask 261120
          %372 = vst.msk [vmem:[#allocation4] sm:$0xff] %vm371, 0.0
        $region60: #{tpu_custom_call.1} parent=39 // pred_fallthru
          _
        %v373 = vld [vmem:[%s301] sm:$0xff]
        %v374 = vmul.f32 %v373, 0.17677669
        %v375 = vld [vmem:[%s311] sm:$0xff]
        %vm376 = vcmask 261120
        %v378 = vsel %vm376, %v374, 0
        %v381 = vsel %vm376, %v375, 0
        %383 = vmatpush.xpose.msra.mxu0 0.0
        %384 = vmatpush.xpose.msra.mxu0 0.0
        %385 = vmatpush.xpose.msra.mxu0 0.0
        %386 = vmatpush.xpose.msra.mxu0 0.0
        %387 = vmatpush.xpose.msra.mxu0 0.0
        %388 = vmatpush.xpose.msra.mxu0 0.0
        %389 = vmatpush.xpose.msra.mxu0 0.0
        %390 = vmatpush.xpose.msra.mxu0 0.0
        %391 = vmatpush.xpose.msra.mxu0 0.0
        %392 = vmatpush.xpose.msra.mxu0 0.0
        %393 = vmatpush.xpose.msra.mxu0 0.0
        %394 = vmatpush.xpose.msra.mxu0 0.0
        %395 = vmatpush.xpose.msra.mxu0 0.0
        %396 = vmatpush.xpose.msra.mxu0 0.0
        %397 = vmatpush.xpose.msra.mxu0 0.0
        %398 = vmatpush.xpose.msra.mxu0 %v381
        %399 = vmatmul.f32.gmra.mxu0 %v378
        %v400 = vpop.f32.mrf.mxu0
        %v401 = vadd.f32 0.0, %v400
        %402 = vdwg.mxu0
        %v403 = vld [vmem:[#allocation2] sm:$0xff]
        %vm404 = vcmask 64512
        %v405 = vsel %vm404, %v401, -inf
        %406 = vmax.xlane.f32.xlu0 %v405
        %v407 = vpop.xlane.xlu0 %406
        %v408 = vmax.f32 %v403, %v407
        %v409 = vsub.f32 %v403, %v408
        %v410 = vmul.f32 %v409, 1.442695
        %v411 = vpow.pop %v410
        %413 = vset.pattern.permute.xlu0 0
        %414 = vperm.xlu0 %413, %v408
        %v415 = vpop.permute.xlu0 %414
        %v417 = vsub.f32 %v401, %v415
        %v418 = vmul.f32 %v417, 1.442695
        %v419 = vpow.pop %v418
        %v420 = vld [vmem:[#allocation3] sm:$0xff]
        %v421 = vmul.f32 %v411, %v420
        %v422 = vsel %vm404, %v419, 0.0
        %423 = vadd.xlane.f32.xlu0 %v422
        %v424 = vpop.xlane.xlu0 %423
        %v425 = vadd.f32 %v421, %v424
        %vm426 = vcmask 7168
        %427 = vst.msk [vmem:[#allocation3] sm:$0xff] %vm426, %v425
        %v428 = vld [vmem:[#allocation4] sm:$0xff]
        %430 = vset.pattern.permute.xlu0 0
        %431 = vperm.xlu0 %430, %v411
        %v432 = vpop.permute.xlu0 %431
        %v434 = vmul.f32 %v432, %v428
        %v435 = vld [vmem:[%s321] sm:$0xff]
        %v437 = vsel %vm404, %v419, 0
        %439 = vmatpush.msra.mxu0 0.0
        %440 = vmatpush.msra.mxu0 0.0
        %441 = vmatpush.msra.mxu0 0.0
        %442 = vmatpush.msra.mxu0 0.0
        %443 = vmatpush.msra.mxu0 0.0
        %444 = vmatpush.msra.mxu0 0.0
        %445 = vmatpush.msra.mxu0 0.0
        %446 = vmatpush.msra.mxu0 0.0
        %447 = vmatpush.msra.mxu0 0.0
        %448 = vmatpush.msra.mxu0 0.0
        %449 = vmatpush.msra.mxu0 0.0
        %450 = vmatpush.msra.mxu0 0.0
        %451 = vmatpush.msra.mxu0 0.0
        %452 = vmatpush.msra.mxu0 0.0
        %453 = vmatpush.msra.mxu0 0.0
        %454 = vmatpush.msra.mxu0 %v435
        %455 = vmatmul.f32.gmra.mxu0 %v437
        %v456 = vpop.f32.mrf.mxu0
        %v457 = vadd.f32 0.0, %v456
        %458 = vdwg.mxu0
        %v459 = vadd.f32 %v434, %v457
        %460 = vst.msk [vmem:[#allocation4] sm:$0xff] %vm376, %v459
        %461 = vst.msk [vmem:[#allocation2] sm:$0xff] %vm426, %v408
        // Predicated region
        $region61: #{tpu_custom_call.1} parent=39 // pred_check
          %p462 = pneg %p364
        $region62: #{tpu_custom_call.1} parent=39 // pred_check_branch
          %464 = sbr.rel (%p462) target = $region64
        $region63: #{tpu_custom_call.1} parent=39 // pred_region
          %v465 = vld [vmem:[#allocation3] sm:$0xff]
          %vm466 = vcmp.eq.f32.partialorder %v465, 0.0
          %v467 = vsel %vm466, 1.0, %v465
          %v468 = vrcp.pop %v467
          %v469 = vld [vmem:[#allocation4] sm:$0xff]
          %471 = vset.pattern.permute.xlu0 0
          %472 = vperm.xlu0 %471, %v468
          %v473 = vpop.permute.xlu0 %472
          %v475 = vmul.f32 %v469, %v473
          %v476 = vld [vmem:[#allocation11] sm:$0xff]
          %v477 = vld [vmem:[#allocation11 + $0x8] sm:$0xff]
          %v478 = vld [vmem:[#allocation11 + $0x10] sm:$0xff]
          %v479 = vld [vmem:[#allocation11 + $0x18] sm:$0xff]
          %v480 = vld [vmem:[%s4] sm:$0x1]
          %v482 = vperm.slane %v480, 0
          %v485 = vsel %vm376, %v475, 0
          %487 = vmatpush.msra.mxu0 0.0
          %488 = vmatpush.msra.mxu0 0.0
          %489 = vmatpush.msra.mxu0 0.0
          %490 = vmatpush.msra.mxu0 0.0
          %491 = vmatpush.msra.mxu0 0.0
          %492 = vmatpush.msra.mxu0 0.0
          %493 = vmatpush.msra.mxu0 0.0
          %494 = vmatpush.msra.mxu0 0.0
          %495 = vmatpush.msra.mxu0 0.0
          %496 = vmatpush.msra.mxu0 0.0
          %497 = vmatpush.msra.mxu0 0.0
          %498 = vmatpush.msra.mxu0 0.0
          %499 = vmatpush.msra.mxu0 %v479
          %500 = vmatpush.msra.mxu0 %v478
          %501 = vmatpush.msra.mxu0 %v477
          %502 = vmatpush.msra.mxu0 %v476
          %503 = vmatmul.f32.gmra.mxu0 %v485
          %v504 = vpop.f32.mrf.mxu0
          %v505 = vadd.f32 %v482, %v504
          %506 = vdwg.mxu0
          %507 = vst.msk [vmem:[%s363] sm:$0xff] %vm376, %v505
        $region64: #{tpu_custom_call.1} parent=39 // pred_fallthru
          _
        %s508 = sand.u32 %s181, 1
        %s509 = scalar_lea.sflag [#allocation7], %s508
        %s510 = sand.u32 %s181, 1
        %s511 = smul.addr %s510, 8
        %s512 = scalar_lea.vmem [#allocation13], %s511
        // Predicated region
        $region65: #{tpu_custom_call.1} parent=39 // pred_check
          %p513 = pneg %p191
        $region66: #{tpu_custom_call.1} parent=39 // pred_check_branch
          %515 = sbr.rel (%p513) target = $region68
        $region67: #{tpu_custom_call.1} parent=39 // pred_region
          %517 = vsyncadd %s509, 0
          %s518 = sadd.s32 %s32, %s31
          %s519 = smul.addr %s518, 8
          %s520 = scalar_lea.hbm %s5, %s519
          %s522 = sshll.u32 %s512, 4
          %s523 = int_to_ptr.vmem [resolvable:$true] %s522
          %s524 = sshll.u32 %s520, 4
          %s525 = int_to_ptr.hbm [resolvable:$true] %s524
          %527 = dma.vmem_to_hbm [thread:$0]  %s523, 128, %s525, %s509
        $region68: #{tpu_custom_call.1} parent=39 // pred_fallthru
          _
      $region40: #{tpu_custom_call.1} parent=5 // pred_fallthru
        _
      %p528 = scmp.le.s32.totalorder 2, %s21
      // Predicated region
      $region69: #{tpu_custom_call.1} parent=5 // pred_check
        %p529 = pneg %p528
      $region70: #{tpu_custom_call.1} parent=5 // pred_check_branch
        %531 = sbr.rel (%p529) target = $region72
      $region71: #{tpu_custom_call.1} parent=5 // pred_region
        %s532 = ssub.s32 %s21, 2
        // Predicated region
        $region73: #{tpu_custom_call.1} parent=71 // pred_check
          %p533 = pneg %p197
        $region74: #{tpu_custom_call.1} parent=71 // pred_check_branch
          %535 = sbr.rel (%p533) target = $region76
        $region75: #{tpu_custom_call.1} parent=71 // pred_region
          %s536 = sand.u32 %s182, 1
          %s537 = scalar_lea.sflag [#allocation7], %s536
          %s538 = sand.u32 %s182, 1
          %s539 = smul.addr %s538, 8
          %s540 = scalar_lea.vmem [#allocation13], %s539
          %542 = dma.done %s537, 128
        $region76: #{tpu_custom_call.1} parent=71 // pred_fallthru
          _
      $region72: #{tpu_custom_call.1} parent=5 // pred_fallthru
        _
    $region6: #{tpu_custom_call.1} parent=1 // loop_footer
      %s25 = sadd.s32 1, %s21
    $region7: #{tpu_custom_call.1} parent=1 // loop_footer_branch
      %20 = sbr.rel target = $region3
    $region8: #{tpu_custom_call.1} parent=1 // loop_exit
      _
    %543 = vsyncpa [#allocation6], 1
    %s544 = scalar_lea.sflag [#allocation6], 1
    %545 = vsyncpa %s544, 1
    %546 = vsyncpa [#allocation9], 1
    %s547 = scalar_lea.sflag [#allocation9], 1
    %548 = vsyncpa %s547, 1
    %549 = vsyncpa [#allocation12], 1
    %550 = vsyncpa [#allocation7], 1
    %s551 = scalar_lea.sflag [#allocation7], 1
    %552 = vsyncpa %s551, 1

</llo_original>
